<compile_context>
chip_gen: v7x
topology: tpu7x:2x2x1
jax: 0.10.0
libtpu: 0.0.40
codegen_flags: <defaults>
</compile_context>

<pallas_src>
import math

import jax
import jax.numpy as jnp
from jax.experimental import pallas as pl
from jax.experimental.pallas import tpu as pltpu


def _round_up(v, m):
    return ((v + m - 1) // m) * m


def _choose_batch_tile(B):
    """Pick a batch tile: big enough to amortize per-step overhead (~600 cyc),
    capped at 512 to limit f32 live-value pressure, and leaving >=2 grid steps
    for large batches (v7x has 2 TensorCores)."""
    if B <= 256:
        return _round_up(B, 16)          # single tile; 16 covers bf16 sublane packing
    half = (B + 1) // 2
    return min(512, _round_up(half, 128))


def _make_mlp_kernel(n_layers):
    """Kernel over one batch tile. refs = (x, w0, b0, ..., w_last_row, b_last, out)."""

    def kernel(x_ref, *refs):
        o_ref = refs[-1]
        p = refs[:-1]

        h = x_ref[...]                                     # bf16 (bt, F)

        # Hidden layers on the MXU: bf16 x bf16 -> f32 accumulation, f32 bias+ReLU.
        for li in range(n_layers - 1):
            w = p[2 * li][...]                             # bf16 (in, out)
            b = p[2 * li + 1][...]                         # f32  (1, out)
            h = jnp.dot(h.astype(jnp.bfloat16), w,
                        preferred_element_type=jnp.float32) + b
            h = jnp.maximum(h, 0.0)

        # Final Linear(h_last -> 1): VPU multiply + lane reduce (XLU), keeps the
        # N=1 matmul off the MXU / result FIFO entirely.
        w_last = p[2 * (n_layers - 1)][...]                # f32 (1, h_last)
        b_last = p[2 * (n_layers - 1) + 1][...]            # f32 (1, 1)
        out = jnp.sum(h * w_last, axis=-1, keepdims=True) + b_last

        o_ref[...] = out.astype(o_ref.dtype)

    return kernel


def numer_torch_forward(x, params, *, batch_tile=None):
    """params: list of (W, b) with W:(in, out) f32, b:(1, out) f32.
    Matches torch's x @ W_t.T + b with W = W_t.T."""
    B, F = x.shape
    n_layers = len(params)
    out_dim = params[-1][0].shape[1]                       # == 1

    bt = _choose_batch_tile(B) if batch_tile is None else _round_up(batch_tile, 16)
    grid = pl.cdiv(B, bt)
    B_pad = grid * bt

    x_p = x.astype(jnp.bfloat16)
    if B_pad != B:
        x_p = jnp.pad(x_p, ((0, B_pad - B), (0, 0)))

    kernel = _make_mlp_kernel(n_layers)

    in_specs = [pl.BlockSpec((bt, F), lambda i: (i, 0))]
    flat_params = []
    for li, (W, b) in enumerate(params):
        if li < n_layers - 1:
            Wk = W.astype(jnp.bfloat16)                    # MXU operand
        else:
            Wk = W.T.astype(jnp.float32)                   # (1, h_last) row, VPU operand
        bk = b.astype(jnp.float32)
        # Weights/biases are tiny here; constant index_map reloads are cheap.
        # TODO(synk): for very large layer_sizes, use pipeline_mode=pl.Buffered(1)
        # on these constant-index blocks (or raise vmem_limit_bytes) on v7x.
        in_specs.append(pl.BlockSpec(Wk.shape, lambda i: (0, 0)))
        in_specs.append(pl.BlockSpec(bk.shape, lambda i: (0, 0)))
        flat_params.extend([Wk, bk])

    # (bt, 1) output store lowers to a masked vst; output bytes are tiny so this
    # is acceptable. TODO(synk): a lane-dense (1, bt) transposed output layout
    # would remove the masked store if this ever becomes store-bound.
    out_spec = pl.BlockSpec((bt, out_dim), lambda i: (i, 0))

    out = pl.pallas_call(
        kernel,
        out_shape=jax.ShapeDtypeStruct((B_pad, out_dim), jnp.float32),
        grid_spec=pltpu.PrefetchScalarGridSpec(
            num_scalar_prefetch=0,
            grid=(grid,),
            in_specs=in_specs,
            out_specs=out_spec,
        ),
        compiler_params=pltpu.CompilerParams(
            dimension_semantics=("parallel",)),
    )(x_p, *flat_params)

    return out[:B] if B_pad != B else out


def init_params(key, n_features, layer_sizes):
    """Deterministic init mimicking nn.Linear defaults (uniform +/- 1/sqrt(fan_in))."""
    dims = [n_features] + list(layer_sizes) + [1]
    params = []
    for i in range(len(dims) - 1):
        fan_in, fan_out = dims[i], dims[i + 1]
        key, kw, kb = jax.random.split(key, 3)
        bound = 1.0 / math.sqrt(fan_in)
        W = jax.random.uniform(kw, (fan_in, fan_out), jnp.float32, -bound, bound)
        b = jax.random.uniform(kb, (1, fan_out), jnp.float32, -bound, bound)
        params.append((W, b))
    return params


def reference_forward(x, params):
    h = x
    n = len(params)
    for li, (W, b) in enumerate(params):
        h = h @ W + b
        if li < n - 1:
            h = jnp.maximum(h, 0.0)
    return h


if __name__ == "__main__":
    n_features = 32
    layer_sizes = [64, 32]

    key = jax.random.PRNGKey(0)
    key, kx1, kx2 = jax.random.split(key, 3)
    params = init_params(key, n_features, layer_sizes)

    # Small shape: single tile, auto batch_tile.
    batch = 16
    x = jax.random.normal(kx1, (batch, n_features), jnp.float32)
    out = jax.block_until_ready(numer_torch_forward(x, params))
    ref = reference_forward(x, params)
    assert out.shape == (batch, 1), out.shape
    # bf16 matmul inputs with f32 accumulation -> loose tolerance vs f32 reference.
    assert jnp.allclose(out, ref, atol=5e-2, rtol=5e-2), "mismatch vs reference (small)"

    # Ragged batch: exercises padding, multi-step grid and explicit batch_tile.
    batch2 = 384
    x2 = jax.random.normal(kx2, (batch2, n_features), jnp.float32)
    out2 = jax.block_until_ready(numer_torch_forward(x2, params, batch_tile=256))
    ref2 = reference_forward(x2, params)
    assert out2.shape == (batch2, 1), out2.shape
    assert jnp.allclose(out2, ref2, atol=5e-2, rtol=5e-2), "mismatch vs reference (ragged)"

    print("KERNEL_OK")
</pallas_src>

<mosaic_0001>
module attributes {stable_mosaic.version = 11 : i64} {
  func.func @kernel(%arg0: i32, %arg1: memref<16x32xbf16, #tpu.memory_space<vmem>>, %arg2: memref<32x64xbf16, #tpu.memory_space<vmem>>, %arg3: memref<1x64xf32, #tpu.memory_space<vmem>>, %arg4: memref<64x32xbf16, #tpu.memory_space<vmem>>, %arg5: memref<1x32xf32, #tpu.memory_space<vmem>>, %arg6: memref<1x32xf32, #tpu.memory_space<vmem>>, %arg7: memref<1x1xf32, #tpu.memory_space<vmem>>, %arg8: memref<16x1xf32, #tpu.memory_space<vmem>>) attributes {dimension_semantics = [#tpu.dimension_semantics<parallel>], iteration_bounds = array<i64: 1>, scalar_prefetch = 0 : i64, scratch_operands = 0 : i64, tpu.core_type = #tpu.core_type<tc>, window_params = [{transform_indices = @transform_0, window_bounds = array<i64: 16, 32>}, {pipeline_mode = #tpu.pipeline_mode<synchronous>, transform_indices = @transform_1, window_bounds = array<i64: 32, 64>}, {pipeline_mode = #tpu.pipeline_mode<synchronous>, transform_indices = @transform_2, window_bounds = array<i64: 1, 64>}, {pipeline_mode = #tpu.pipeline_mode<synchronous>, transform_indices = @transform_3, window_bounds = array<i64: 64, 32>}, {pipeline_mode = #tpu.pipeline_mode<synchronous>, transform_indices = @transform_4, window_bounds = array<i64: 1, 32>}, {pipeline_mode = #tpu.pipeline_mode<synchronous>, transform_indices = @transform_5, window_bounds = array<i64: 1, 32>}, {pipeline_mode = #tpu.pipeline_mode<synchronous>, transform_indices = @transform_6, window_bounds = array<i64: 1, 1>}, {transform_indices = @transform_7, window_bounds = array<i64: 16, 1>}]} {
    %c0 = arith.constant 0 : index
    %c0_0 = arith.constant 0 : index
    %0 = vector.load %arg1[%c0, %c0_0] : memref<16x32xbf16, #tpu.memory_space<vmem>>, vector<16x32xbf16>
    %c0_1 = arith.constant 0 : index
    %c0_2 = arith.constant 0 : index
    %1 = vector.load %arg2[%c0_1, %c0_2] : memref<32x64xbf16, #tpu.memory_space<vmem>>, vector<32x64xbf16>
    %c0_3 = arith.constant 0 : index
    %c0_4 = arith.constant 0 : index
    %2 = vector.load %arg3[%c0_3, %c0_4] : memref<1x64xf32, #tpu.memory_space<vmem>>, vector<1x64xf32>
    %cst = arith.constant dense<0.000000e+00> : vector<16x64xf32>
    %3 = tpu.matmul %0, %1, %cst {dimension_numbers = #tpu.dot_dimension_numbers<[1], [0], [0], [1], [0, 0, 1, 1], [], []>} : vector<16x32xbf16>, vector<32x64xbf16>, vector<16x64xf32> -> vector<16x64xf32>
    %4 = vector.broadcast %2 : vector<1x64xf32> to vector<16x64xf32>
    %5 = arith.addf %3, %4 : vector<16x64xf32>
    %cst_5 = arith.constant 0.000000e+00 : f32
    %6 = vector.broadcast %cst_5 : f32 to vector<16x64xf32>
    %7 = arith.maximumf %5, %6 : vector<16x64xf32>
    %c0_6 = arith.constant 0 : index
    %c0_7 = arith.constant 0 : index
    %8 = vector.load %arg4[%c0_6, %c0_7] : memref<64x32xbf16, #tpu.memory_space<vmem>>, vector<64x32xbf16>
    %c0_8 = arith.constant 0 : index
    %c0_9 = arith.constant 0 : index
    %9 = vector.load %arg5[%c0_8, %c0_9] : memref<1x32xf32, #tpu.memory_space<vmem>>, vector<1x32xf32>
    %10 = arith.truncf %7 : vector<16x64xf32> to vector<16x64xbf16>
    %cst_10 = arith.constant dense<0.000000e+00> : vector<16x32xf32>
    %11 = tpu.matmul %10, %8, %cst_10 {dimension_numbers = #tpu.dot_dimension_numbers<[1], [0], [0], [1], [0, 0, 1, 1], [], []>} : vector<16x64xbf16>, vector<64x32xbf16>, vector<16x32xf32> -> vector<16x32xf32>
    %12 = vector.broadcast %9 : vector<1x32xf32> to vector<16x32xf32>
    %13 = arith.addf %11, %12 : vector<16x32xf32>
    %cst_11 = arith.constant 0.000000e+00 : f32
    %14 = vector.broadcast %cst_11 : f32 to vector<16x32xf32>
    %15 = arith.maximumf %13, %14 : vector<16x32xf32>
    %c0_12 = arith.constant 0 : index
    %c0_13 = arith.constant 0 : index
    %16 = vector.load %arg6[%c0_12, %c0_13] : memref<1x32xf32, #tpu.memory_space<vmem>>, vector<1x32xf32>
    %c0_14 = arith.constant 0 : index
    %c0_15 = arith.constant 0 : index
    %17 = vector.load %arg7[%c0_14, %c0_15] : memref<1x1xf32, #tpu.memory_space<vmem>>, vector<1x1xf32>
    %18 = vector.broadcast %16 : vector<1x32xf32> to vector<16x32xf32>
    %19 = arith.mulf %15, %18 : vector<16x32xf32>
    %cst_16 = arith.constant dense<0.000000e+00> : vector<16xf32>
    %20 = vector.multi_reduction <add>, %19, %cst_16 [1] : vector<16x32xf32> to vector<16xf32>
    %21 = vector.shape_cast %20 : vector<16xf32> to vector<16x1xf32>
    %22 = vector.broadcast %17 : vector<1x1xf32> to vector<16x1xf32>
    %23 = arith.addf %21, %22 : vector<16x1xf32>
    %c0_17 = arith.constant 0 : index
    %c0_18 = arith.constant 0 : index
    %24 = vector.load %arg8[%c0_17, %c0_18] : memref<16x1xf32, #tpu.memory_space<vmem>>, vector<16x1xf32>
    tpu.vector_store %arg8[%c0_17, %c0_18], %23 {strides = array<i32>} : memref<16x1xf32, #tpu.memory_space<vmem>>, vector<16x1xf32>,
    return
  }
  func.func @transform_0(%arg0: i32) -> (i32, i32) {
    %c0_i32 = arith.constant 0 : i32
    %c0_i32_0 = arith.constant 0 : i32
    return %arg0, %c0_i32 : i32, i32
  }
  func.func @transform_1(%arg0: i32) -> (i32, i32) {
    %c0_i32 = arith.constant 0 : i32
    %c0_i32_0 = arith.constant 0 : i32
    %c0_i32_1 = arith.constant 0 : i32
    return %c0_i32, %c0_i32_0 : i32, i32
  }
  func.func @transform_2(%arg0: i32) -> (i32, i32) {
    %c0_i32 = arith.constant 0 : i32
    %c0_i32_0 = arith.constant 0 : i32
    %c0_i32_1 = arith.constant 0 : i32
    return %c0_i32, %c0_i32_0 : i32, i32
  }
  func.func @transform_3(%arg0: i32) -> (i32, i32) {
    %c0_i32 = arith.constant 0 : i32
    %c0_i32_0 = arith.constant 0 : i32
    %c0_i32_1 = arith.constant 0 : i32
    return %c0_i32, %c0_i32_0 : i32, i32
  }
  func.func @transform_4(%arg0: i32) -> (i32, i32) {
    %c0_i32 = arith.constant 0 : i32
    %c0_i32_0 = arith.constant 0 : i32
    %c0_i32_1 = arith.constant 0 : i32
    return %c0_i32, %c0_i32_0 : i32, i32
  }
  func.func @transform_5(%arg0: i32) -> (i32, i32) {
    %c0_i32 = arith.constant 0 : i32
    %c0_i32_0 = arith.constant 0 : i32
    %c0_i32_1 = arith.constant 0 : i32
    return %c0_i32, %c0_i32_0 : i32, i32
  }
  func.func @transform_6(%arg0: i32) -> (i32, i32) {
    %c0_i32 = arith.constant 0 : i32
    %c0_i32_0 = arith.constant 0 : i32
    %c0_i32_1 = arith.constant 0 : i32
    return %c0_i32, %c0_i32_0 : i32, i32
  }
  func.func @transform_7(%arg0: i32) -> (i32, i32) {
    %c0_i32 = arith.constant 0 : i32
    %c0_i32_0 = arith.constant 0 : i32
    return %arg0, %c0_i32 : i32, i32
  }
}

</mosaic_0001>

<llo_original>
// kernel: tpu_custom_call.1
$region0: #{tpu_custom_call.1}
  #allocation0 [shape = 'u32[]', space=smem, size = 0x4, offset = 0x4, fixed_abs, tag = 'smem constant byte address 0x4 - core index']
  #allocation1 [shape = 'u32[144,128]{1,0:T(1,128)}', space=vmem, size = 0x12000, scoped, tag = 'internal scratch']
  #allocation2 [shape = 'f32[1,1]{1,0:T(1,128)S(1)}', space=vmem, size = 0x200, scoped, tag = 'scoped memory for tpu_custom_call.1']
  %s0 = inlined_call_operand.vmem [shape: bf16[16,32], index: 0, kind: input, shape index: {}]
  %s1 = inlined_call_operand.vmem [shape: bf16[32,64], index: 1, kind: input, shape index: {}]
  %s2 = inlined_call_operand.vmem [shape: f32[1,64], index: 2, kind: input, shape index: {}]
  %s3 = inlined_call_operand.vmem [shape: bf16[64,32], index: 3, kind: input, shape index: {}]
  %s4 = inlined_call_operand.vmem [shape: f32[1,32], index: 4, kind: input, shape index: {}]
  %s5 = inlined_call_operand.vmem [shape: f32[1,32], index: 5, kind: input, shape index: {}]
  %s6 = inlined_call_operand.<no memory space> [shape: f32[1,1], index: 6, kind: input, shape index: {}]
  %s7 = inlined_call_operand.vmem [shape: f32[16,1], index: 7, kind: output, shape index: {}]
  %s8 = sld [smem:[#allocation0]]
  $region38: #{tpu_custom_call.1} parent=0
    _
  %s10 = ssub.s32 1, %s8
  %s11 = scalar_select 0, %s10, %s8
  %v12 = vstv %s6
  %13 = vst [vmem:[#allocation2] sm:$0x1] %v12
  // Predicated region
  $region2: #{tpu_custom_call.1} parent=0 // pred_check
    _
  $region3: #{tpu_custom_call.1} parent=0 // pred_check_branch
    %15 = sbr.rel (0) target = $region5
  $region4: #{tpu_custom_call.1} parent=0 // pred_region
    _
  $region5: #{tpu_custom_call.1} parent=0 // pred_fallthru
    _
  // Predicated region
  $region6: #{tpu_custom_call.1} parent=0 // pred_check
    _
  $region7: #{tpu_custom_call.1} parent=0 // pred_check_branch
    %17 = sbr.rel (0) target = $region9
  $region8: #{tpu_custom_call.1} parent=0 // pred_region
    _
  $region9: #{tpu_custom_call.1} parent=0 // pred_fallthru
    _
  // Predicated region
  $region10: #{tpu_custom_call.1} parent=0 // pred_check
    _
  $region11: #{tpu_custom_call.1} parent=0 // pred_check_branch
    %19 = sbr.rel (0) target = $region13
  $region12: #{tpu_custom_call.1} parent=0 // pred_region
    _
  $region13: #{tpu_custom_call.1} parent=0 // pred_fallthru
    _
  // Predicated region
  $region14: #{tpu_custom_call.1} parent=0 // pred_check
    _
  $region15: #{tpu_custom_call.1} parent=0 // pred_check_branch
    %21 = sbr.rel (0) target = $region17
  $region16: #{tpu_custom_call.1} parent=0 // pred_region
    _
  $region17: #{tpu_custom_call.1} parent=0 // pred_fallthru
    _
  // Predicated region
  $region18: #{tpu_custom_call.1} parent=0 // pred_check
    _
  $region19: #{tpu_custom_call.1} parent=0 // pred_check_branch
    %23 = sbr.rel (0) target = $region21
  $region20: #{tpu_custom_call.1} parent=0 // pred_region
    _
  $region21: #{tpu_custom_call.1} parent=0 // pred_fallthru
    _
  // Predicated region
  $region22: #{tpu_custom_call.1} parent=0 // pred_check
    _
  $region23: #{tpu_custom_call.1} parent=0 // pred_check_branch
    %25 = sbr.rel (0) target = $region25
  $region24: #{tpu_custom_call.1} parent=0 // pred_region
    _
  $region25: #{tpu_custom_call.1} parent=0 // pred_fallthru
    _
  // Predicated region
  $region26: #{tpu_custom_call.1} parent=0 // pred_check
    _
  $region27: #{tpu_custom_call.1} parent=0 // pred_check_branch
    %27 = sbr.rel (0) target = $region29
  $region28: #{tpu_custom_call.1} parent=0 // pred_region
    _
  $region29: #{tpu_custom_call.1} parent=0 // pred_fallthru
    _
  %v29 = vld [vmem:[%s0] sm:$0xf]
  %v30 = vld [vmem:[%s0 + $0x4] sm:$0xf]
  %v31 = vld [vmem:[%s1] sm:$0xf]
  %v32 = vld [vmem:[%s1 + $0x4] sm:$0xf]
  %v33 = vld [vmem:[%s1 + $0x8] sm:$0xf]
  %v34 = vld [vmem:[%s1 + $0xc] sm:$0xf]
  %v35 = vld [vmem:[%s2] sm:$0x1]
  %v37 = vlaneseq
  %v38 = vshrl.u32 %v37, 7
  %v39 = vsub.s32 0, %v38
  %v40 = vrot.slane %v35, %v39
  %v44 = vunpack.c.l.b16 %v29
  %v45 = vunpack.c.l.b16 %v30
  %v46 = vpack.c.b16 %v45, %v44
  %v51 = vunpack.c.l.b16 %v31
  %v52 = vunpack.c.l.b16 %v32
  %v53 = vunpack.c.l.b16 %v33
  %v54 = vunpack.c.l.b16 %v34
  %v55 = vpack.c.b16 %v52, %v51
  %v56 = vpack.c.b16 %v54, %v53
  %vm59 = vcmask 261120
  %v61 = vsel %vm59, %v46, 0
  %63 = vmatprep.subr.bf16.mxu0 0
  %64 = vmatpush1.bf16.msra.mxu0 %v55
  %65 = vmatprep.subr.bf16.mxu0 0
  %66 = vmatpush1.bf16.msra.mxu0 %v56
  %67 = vmatprep.subr.bf16.mxu0 0
  %68 = vmatpush1.bf16.msra.mxu0 0
  %69 = vmatprep.subr.bf16.mxu0 0
  %70 = vmatpush1.bf16.msra.mxu0 0
  %71 = vmatprep.subr.bf16.mxu0 0
  %72 = vmatpush1.bf16.msra.mxu0 0
  %73 = vmatprep.subr.bf16.mxu0 0
  %74 = vmatpush1.bf16.msra.mxu0 0
  %75 = vmatprep.subr.bf16.mxu0 0
  %76 = vmatpush1.bf16.msra.mxu0 0
  %77 = vmatprep.subr.bf16.mxu0 0
  %78 = vmatpush1.bf16.msra.mxu0 0
  %79 = vmatprep.subr.bf16.mxu0 0
  %80 = vmatpush1.bf16.msra.mxu0 0
  %81 = vmatprep.subr.bf16.mxu0 0
  %82 = vmatpush1.bf16.msra.mxu0 0
  %83 = vmatprep.subr.bf16.mxu0 0
  %84 = vmatpush1.bf16.msra.mxu0 0
  %85 = vmatprep.subr.bf16.mxu0 0
  %86 = vmatpush1.bf16.msra.mxu0 0
  %87 = vmatprep.subr.bf16.mxu0 0
  %88 = vmatpush1.bf16.msra.mxu0 0
  %89 = vmatprep.subr.bf16.mxu0 0
  %90 = vmatpush1.bf16.msra.mxu0 0
  %91 = vmatprep.subr.bf16.mxu0 0
  %92 = vmatpush1.bf16.msra.mxu0 0
  %93 = vmatprep.subr.bf16.mxu0 0
  %94 = vmatpush1.bf16.msra.mxu0 0
  %95 = vmatprep.mubr.bf16.mxu0 0
  %96 = vmatmul.mubr.bf16.gmra.mrb[0].mxu0 %v61
  %v97 = vpop.f32.mrb[0].mxu0
  %v98 = vadd.f32 %v40, %v97
  %v99 = vpop.f32.mrb[0].mxu0
  %v100 = vpop.f32.mrb[0].mxu0
  %v101 = vadd.f32 %v40, %v100
  %v102 = vpop.f32.mrb[0].mxu0
  %103 = vdwg.mxu0
  %v104 = vmax.f32 %v98, 0.0
  %v105 = vmax.f32 %v101, 0.0
  %v106 = vld [vmem:[%s3] sm:$0xf]
  %v107 = vld [vmem:[%s3 + $0x4] sm:$0xf]
  %v108 = vld [vmem:[%s3 + $0x8] sm:$0xf]
  %v109 = vld [vmem:[%s3 + $0xc] sm:$0xf]
  %v110 = vld [vmem:[%s3 + $0x10] sm:$0xf]
  %v111 = vld [vmem:[%s3 + $0x14] sm:$0xf]
  %v112 = vld [vmem:[%s3 + $0x18] sm:$0xf]
  %v113 = vld [vmem:[%s3 + $0x1c] sm:$0xf]
  %v114 = vld [vmem:[%s4] sm:$0x1]
  %v115 = vpack.c.bf16 %v105, %v104
  %v117 = vlaneseq
  %v118 = vshrl.u32 %v117, 7
  %v119 = vsub.s32 0, %v118
  %v120 = vrot.slane %v114, %v119
  %v130 = vunpack.c.l.b16 %v106
  %v131 = vunpack.c.l.b16 %v107
  %v132 = vunpack.c.l.b16 %v108
  %v133 = vunpack.c.l.b16 %v109
  %v134 = vunpack.c.l.b16 %v110
  %v135 = vunpack.c.l.b16 %v111
  %v136 = vunpack.c.l.b16 %v112
  %v137 = vunpack.c.l.b16 %v113
  %v138 = vpack.c.b16 %v131, %v130
  %v139 = vpack.c.b16 %v133, %v132
  %v140 = vpack.c.b16 %v135, %v134
  %v141 = vpack.c.b16 %v137, %v136
  %vm146 = vcmask 523264
  %v148 = vsel %vm146, %v115, 0
  %150 = vmatprep.subr.bf16.mxu0 0
  %151 = vmatpush1.bf16.msra.mxu0 %v138
  %152 = vmatprep.subr.bf16.mxu0 0
  %153 = vmatpush1.bf16.msra.mxu0 %v139
  %154 = vmatprep.subr.bf16.mxu0 0
  %155 = vmatpush1.bf16.msra.mxu0 %v140
  %156 = vmatprep.subr.bf16.mxu0 0
  %157 = vmatpush1.bf16.msra.mxu0 %v141
  %158 = vmatprep.subr.bf16.mxu0 0
  %159 = vmatpush1.bf16.msra.mxu0 0
  %160 = vmatprep.subr.bf16.mxu0 0
  %161 = vmatpush1.bf16.msra.mxu0 0
  %162 = vmatprep.subr.bf16.mxu0 0
  %163 = vmatpush1.bf16.msra.mxu0 0
  %164 = vmatprep.subr.bf16.mxu0 0
  %165 = vmatpush1.bf16.msra.mxu0 0
  %166 = vmatprep.subr.bf16.mxu0 0
  %167 = vmatpush1.bf16.msra.mxu0 0
  %168 = vmatprep.subr.bf16.mxu0 0
  %169 = vmatpush1.bf16.msra.mxu0 0
  %170 = vmatprep.subr.bf16.mxu0 0
  %171 = vmatpush1.bf16.msra.mxu0 0
  %172 = vmatprep.subr.bf16.mxu0 0
  %173 = vmatpush1.bf16.msra.mxu0 0
  %174 = vmatprep.subr.bf16.mxu0 0
  %175 = vmatpush1.bf16.msra.mxu0 0
  %176 = vmatprep.subr.bf16.mxu0 0
  %177 = vmatpush1.bf16.msra.mxu0 0
  %178 = vmatprep.subr.bf16.mxu0 0
  %179 = vmatpush1.bf16.msra.mxu0 0
  %180 = vmatprep.subr.bf16.mxu0 0
  %181 = vmatpush1.bf16.msra.mxu0 0
  %182 = vmatprep.mubr.bf16.mxu0 0
  %183 = vmatmul.mubr.bf16.gmra.mrb[0].mxu0 %v148
  %v184 = vpop.f32.mrb[0].mxu0
  %v185 = vadd.f32 %v120, %v184
  %v186 = vpop.f32.mrb[0].mxu0
  %v187 = vpop.f32.mrb[0].mxu0
  %v188 = vadd.f32 %v120, %v187
  %v189 = vpop.f32.mrb[0].mxu0
  %190 = vdwg.mxu0
  %v191 = vmax.f32 %v185, 0.0
  %v192 = vmax.f32 %v188, 0.0
  %v193 = vld [vmem:[%s5] sm:$0x1]
  %v194 = vld [vmem:[#allocation2] sm:$0x1]
  %v196 = vlaneseq
  %v197 = vshrl.u32 %v196, 7
  %v198 = vsub.s32 0, %v197
  %v199 = vrot.slane %v193, %v198
  %v201 = vmul.f32 %v191, %v199
  %v202 = vmul.f32 %v192, %v199
  %v203 = vsel %vm59, %v201, 0.0
  %204 = vadd.xlane.f32.xlu0 %v203
  %v205 = vpop.xlane.xlu0 %204
  %v206 = vsel %vm59, %v202, 0.0
  %207 = vadd.xlane.f32.xlu0 %v206
  %v208 = vpop.xlane.xlu0 %207
  %v210 = vlaneseq
  %v211 = vshrl.u32 %v210, 7
  %v212 = vsub.s32 0, %v211
  %v213 = vrot.slane %v194, %v212
  %v215 = vadd.f32 %v205, %v213
  %v216 = vadd.f32 %v208, %v213
  %vm217 = vcmask 7168
  %218 = vst.msk [vmem:[%s7] sm:$0xff] %vm217, %v215
  %219 = vst.msk [vmem:[%s7 + $0x8] sm:$0xff] %vm217, %v216
  // Predicated region
  $region30: #{tpu_custom_call.1} parent=0 // pred_check
    _
  $region31: #{tpu_custom_call.1} parent=0 // pred_check_branch
    %221 = sbr.rel (0) target = $region33
  $region32: #{tpu_custom_call.1} parent=0 // pred_region
    _
  $region33: #{tpu_custom_call.1} parent=0 // pred_fallthru
    _
  // Predicated region
  $region34: #{tpu_custom_call.1} parent=0 // pred_check
    _
  $region35: #{tpu_custom_call.1} parent=0 // pred_check_branch
    %223 = sbr.rel (0) target = $region37
  $region36: #{tpu_custom_call.1} parent=0 // pred_region
    _
  $region37: #{tpu_custom_call.1} parent=0 // pred_fallthru
    _

</llo_original>
